<compile_context>
chip_gen: v6e
topology: v6e:2x2x1
jax: 0.10.0
libtpu: 0.0.40
codegen_flags: <defaults>
</compile_context>

<pallas_src>
import functools

import jax
import jax.numpy as jnp
from jax.experimental import pallas as pl
from jax.experimental.pallas import tpu as pltpu


def _round_up(v, m):
    return ((v + m - 1) // m) * m


def _pick_tile(n, requested):
    """Largest tile <= requested that divides n and is a multiple of 16 (bf16 sublane
    packing), falling back to the full (untiled) extent."""
    tm = min(requested, n)
    for cand in range(tm, 0, -1):
        if n % cand == 0 and (cand % 16 == 0 or cand == n):
            return cand
    return n


# --------------------------------------------------------------------------- #
# Pass 1: fused SAGEConv matmuls + residual projection + partial BN statistics #
# --------------------------------------------------------------------------- #
def _compute_kernel(a_ref, xb_ref, x_ref, w_ref, b_ref,
                    hres_ref, stats_ref, *, cout_pad):
    # a_ref   : (TM, N)        bf16  row panel of row-normalized adjacency
    # xb_ref  : (N,  Cin)      bf16  full node features (aggregation operand, resident)
    # x_ref   : (TM, Cin)      f32   this tile's node features (self / residual path)
    # w_ref   : (2Cin, 2Cp)    f32   [[W_l, 0], [W_r, W_res_or_I]]
    # b_ref   : (1,   2Cp)     f32   [b_l | b_res_or_0]
    # hres_ref: (TM,  2Cp)     f32   [h | res]   (pre-BN)
    # stats_ref: (8, Cp)       f32   row0 = sum(h), row1 = sum(h*h) over this tile

    # Neighbor-mean aggregation on the MXU (bf16 operands, f32 accumulate).
    agg = jnp.dot(a_ref[...], xb_ref[...],
                  preferred_element_type=jnp.float32)              # (TM, Cin)

    # One fused MXU pass for lin_l + lin_r + residual projection.
    z = jnp.concatenate([agg, x_ref[...]], axis=-1)                # (TM, 2Cin)
    hres = jnp.dot(z, w_ref[...],
                   preferred_element_type=jnp.float32) + b_ref[...]
    hres_ref[...] = hres

    # Per-tile partial BatchNorm statistics (global combine happens in glue).
    h = hres[:, :cout_pad]
    s = jnp.sum(h, axis=0, keepdims=True)                          # (1, Cp)
    sq = jnp.sum(h * h, axis=0, keepdims=True)                     # (1, Cp)
    row = jax.lax.broadcasted_iota(jnp.int32, (8, cout_pad), 0)
    stats_ref[...] = jnp.where(row == 0, s, jnp.where(row == 1, sq, 0.0))


# --------------------------------------------------------------------------- #
# Pass 2: apply global BN (scale/shift), ReLU, add residual                    #
# --------------------------------------------------------------------------- #
def _finalize_kernel(hres_ref, scale_ref, shift_ref, o_ref, *, cout_pad):
    hres = hres_ref[...]
    h = hres[:, :cout_pad]
    res = hres[:, cout_pad:]
    y = jnp.maximum(h * scale_ref[...] + shift_ref[...], 0.0) + res
    o_ref[...] = y.astype(o_ref.dtype)


def residual_gcn_layer(x, edge_index, params, *, eps: float = 1e-5, tile_m: int = 256):
    """x: [N, Cin] f32, edge_index: [2, E] int32 (row0 = src, row1 = dst)."""
    n, cin = x.shape
    cout = params["w_l"].shape[1]
    cout_pad = _round_up(max(cout, 128), 128)
    tm = _pick_tile(n, tile_m)
    num_tiles = n // tm

    # ---- glue: scatter-mean expressed as a row-normalized adjacency (bf16) ----
    src, dst = edge_index[0], edge_index[1]
    ones = jnp.ones(src.shape[0], jnp.float32)
    deg = jnp.zeros((n,), jnp.float32).at[dst].add(ones)
    adj = jnp.zeros((n, n), jnp.float32).at[dst, src].add(ones)
    adj = (adj / jnp.maximum(deg, 1.0)[:, None]).astype(jnp.bfloat16)
    x_bf16 = x.astype(jnp.bfloat16)

    # ---- glue: fuse W_l / W_r / (W_res or identity) into one lane-padded weight ----
    use_res = params["w_res"] is not None
    w_big = jnp.zeros((2 * cin, 2 * cout_pad), jnp.float32)
    w_big = w_big.at[:cin, :cout].set(params["w_l"])
    w_big = w_big.at[cin:, :cout].set(params["w_r"])
    b_big = jnp.zeros((1, 2 * cout_pad), jnp.float32)
    b_big = b_big.at[0, :cout].set(params["b_l"])
    if use_res:
        w_big = w_big.at[cin:, cout_pad:cout_pad + cout].set(params["w_res"])
        b_big = b_big.at[0, cout_pad:cout_pad + cout].set(params["b_res"])
    else:
        w_big = w_big.at[cin:, cout_pad:cout_pad + cin].set(jnp.eye(cin, dtype=jnp.float32))

    cparams = pltpu.CompilerParams(
        dimension_semantics=("parallel",),
        vmem_limit_bytes=32 * 1024 * 1024,
    )

    # ---- pass 1: tiled fused matmuls + per-tile BN partial stats ----
    hres, stats = pl.pallas_call(
        functools.partial(_compute_kernel, cout_pad=cout_pad),
        grid=(num_tiles,),
        in_specs=[
            pl.BlockSpec((tm, n), lambda i: (i, 0)),                 # adjacency row panel
            pl.BlockSpec((n, cin), lambda i: (0, 0)),                # full x (stays resident)
            pl.BlockSpec((tm, cin), lambda i: (i, 0)),               # x tile (self/residual)
            pl.BlockSpec((2 * cin, 2 * cout_pad), lambda i: (0, 0)),  # fused weights
            pl.BlockSpec((1, 2 * cout_pad), lambda i: (0, 0)),        # fused bias
        ],
        out_specs=[
            pl.BlockSpec((tm, 2 * cout_pad), lambda i: (i, 0)),
            pl.BlockSpec((8, cout_pad), lambda i: (i, 0)),
        ],
        out_shape=[
            jax.ShapeDtypeStruct((n, 2 * cout_pad), jnp.float32),
            jax.ShapeDtypeStruct((num_tiles * 8, cout_pad), jnp.float32),
        ],
        compiler_params=cparams,
    )(adj, x_bf16, x, w_big, b_big)

    # ---- glue: combine O(Cout) partial stats -> BN scale / shift ----
    stats = stats.reshape(num_tiles, 8, cout_pad)
    total = stats[:, 0, :].sum(axis=0)
    total_sq = stats[:, 1, :].sum(axis=0)
    mean = total / n
    var = jnp.maximum(total_sq / n - mean * mean, 0.0)   # biased var (train-mode BN fwd)
    gamma = jnp.zeros((cout_pad,), jnp.float32).at[:cout].set(params["gamma"])
    beta = jnp.zeros((cout_pad,), jnp.float32).at[:cout].set(params["beta"])
    scale = gamma * jax.lax.rsqrt(var + eps)
    shift = beta - mean * scale

    # ---- pass 2: tiled normalize + ReLU + residual (lane-dense stores) ----
    out_pad = pl.pallas_call(
        functools.partial(_finalize_kernel, cout_pad=cout_pad),
        grid=(num_tiles,),
        in_specs=[
            pl.BlockSpec((tm, 2 * cout_pad), lambda i: (i, 0)),
            pl.BlockSpec((1, cout_pad), lambda i: (0, 0)),
            pl.BlockSpec((1, cout_pad), lambda i: (0, 0)),
        ],
        out_specs=pl.BlockSpec((tm, cout_pad), lambda i: (i, 0)),
        out_shape=jax.ShapeDtypeStruct((n, cout_pad), jnp.float32),
        compiler_params=cparams,
    )(hres, scale.reshape(1, cout_pad), shift.reshape(1, cout_pad))

    return out_pad[:, :cout]


# --------------------------------------------------------------------------- #
# Pure-JAX reference (module semantics) and parameter construction             #
# --------------------------------------------------------------------------- #
def _reference(x, edge_index, params, eps=1e-5):
    n = x.shape[0]
    src, dst = edge_index[0], edge_index[1]
    ones = jnp.ones(src.shape[0], x.dtype)
    deg = jnp.zeros((n,), x.dtype).at[dst].add(ones)
    agg = jnp.zeros_like(x).at[dst].add(x[src]) / jnp.maximum(deg, 1.0)[:, None]
    h = agg @ params["w_l"] + params["b_l"] + x @ params["w_r"]
    mean = h.mean(axis=0)
    var = ((h - mean) ** 2).mean(axis=0)
    h = (h - mean) * jax.lax.rsqrt(var + eps) * params["gamma"] + params["beta"]
    out = jnp.maximum(h, 0.0)
    if params["w_res"] is not None:
        res = x @ params["w_res"] + params["b_res"]
    else:
        res = x
    return out + res


def init_params(key, in_channels, out_channels):
    ks = jax.random.split(key, 6)
    scale = 0.1
    params = {
        "w_l": scale * jax.random.normal(ks[0], (in_channels, out_channels), jnp.float32),
        "b_l": scale * jax.random.normal(ks[1], (out_channels,), jnp.float32),
        "w_r": scale * jax.random.normal(ks[2], (in_channels, out_channels), jnp.float32),
        "gamma": 1.0 + scale * jax.random.normal(ks[3], (out_channels,), jnp.float32),
        "beta": scale * jax.random.normal(ks[4], (out_channels,), jnp.float32),
    }
    if in_channels != out_channels:
        kr1, kr2 = jax.random.split(ks[5])
        params["w_res"] = scale * jax.random.normal(kr1, (in_channels, out_channels), jnp.float32)
        params["b_res"] = scale * jax.random.normal(kr2, (out_channels,), jnp.float32)
    else:
        params["w_res"] = None
        params["b_res"] = None
    return params


if __name__ == "__main__":
    key = jax.random.PRNGKey(0)
    k_x, k_e, k_p = jax.random.split(key, 3)

    N = 32            # number of nodes
    E = 96            # number of edges
    C_IN = 8          # in_channels
    C_OUT = 16        # out_channels (!= C_IN so the res_linear branch is exercised)

    x = jax.random.normal(k_x, (N, C_IN), jnp.float32)
    edge_index = jax.random.randint(k_e, (2, E), 0, N, jnp.int32)
    params = init_params(k_p, C_IN, C_OUT)

    out = residual_gcn_layer(x, edge_index, params, tile_m=16)   # grid = (2,)
    jax.block_until_ready(out)

    assert out.shape == (N, C_OUT)
    assert out.dtype == jnp.float32
    assert bool(jnp.all(jnp.isfinite(out)))

    ref = _reference(x, edge_index, params)
    err = float(jnp.max(jnp.abs(out - ref)))
    # bf16 adjacency aggregation introduces ~1e-3 level error; check loosely.
    assert err < 5e-2, f"max abs error vs reference: {err}"
    print("KERNEL_OK")
</pallas_src>

<mosaic_0001>
module attributes {stable_mosaic.version = 11 : i64} {
  func.func @_compute_kernel(%arg0: i32, %arg1: memref<16x32xbf16, #tpu.memory_space<vmem>>, %arg2: memref<32x8xbf16, #tpu.memory_space<vmem>>, %arg3: memref<16x8xf32, #tpu.memory_space<vmem>>, %arg4: memref<16x256xf32, #tpu.memory_space<vmem>>, %arg5: memref<1x256xf32, #tpu.memory_space<vmem>>, %arg6: memref<16x256xf32, #tpu.memory_space<vmem>>, %arg7: memref<8x128xf32, #tpu.memory_space<vmem>>) attributes {dimension_semantics = [#tpu.dimension_semantics<parallel>], iteration_bounds = array<i64: 2>, scalar_prefetch = 0 : i64, scratch_operands = 0 : i64, tpu.core_type = #tpu.core_type<tc>, window_params = [{transform_indices = @transform_0, window_bounds = array<i64: 16, 32>}, {pipeline_mode = #tpu.pipeline_mode<synchronous>, transform_indices = @transform_1, window_bounds = array<i64: 32, 8>}, {transform_indices = @transform_2, window_bounds = array<i64: 16, 8>}, {pipeline_mode = #tpu.pipeline_mode<synchronous>, transform_indices = @transform_3, window_bounds = array<i64: 16, 256>}, {pipeline_mode = #tpu.pipeline_mode<synchronous>, transform_indices = @transform_4, window_bounds = array<i64: 1, 256>}, {transform_indices = @transform_5, window_bounds = array<i64: 16, 256>}, {transform_indices = @transform_6, window_bounds = array<i64: 8, 128>}]} {
    %c0 = arith.constant 0 : index
    %c0_0 = arith.constant 0 : index
    %0 = vector.load %arg1[%c0, %c0_0] : memref<16x32xbf16, #tpu.memory_space<vmem>>, vector<16x32xbf16>
    %c0_1 = arith.constant 0 : index
    %c0_2 = arith.constant 0 : index
    %1 = vector.load %arg2[%c0_1, %c0_2] : memref<32x8xbf16, #tpu.memory_space<vmem>>, vector<32x8xbf16>
    %cst = arith.constant dense<0.000000e+00> : vector<16x8xf32>
    %2 = tpu.matmul %0, %1, %cst {dimension_numbers = #tpu.dot_dimension_numbers<[1], [0], [0], [1], [0, 0, 1, 1], [], []>} : vector<16x32xbf16>, vector<32x8xbf16>, vector<16x8xf32> -> vector<16x8xf32>
    %c0_3 = arith.constant 0 : index
    %c0_4 = arith.constant 0 : index
    %3 = vector.load %arg3[%c0_3, %c0_4] : memref<16x8xf32, #tpu.memory_space<vmem>>, vector<16x8xf32>
    %4 = tpu.concatenate %2, %3 in 1 : vector<16x8xf32>, vector<16x8xf32> -> vector<16x16xf32>
    %c0_5 = arith.constant 0 : index
    %c0_6 = arith.constant 0 : index
    %5 = vector.load %arg4[%c0_5, %c0_6] : memref<16x256xf32, #tpu.memory_space<vmem>>, vector<16x256xf32>
    %cst_7 = arith.constant dense<0.000000e+00> : vector<16x256xf32>
    %6 = tpu.matmul %4, %5, %cst_7 {dimension_numbers = #tpu.dot_dimension_numbers<[1], [0], [0], [1], [0, 0, 1, 1], [], []>} : vector<16x16xf32>, vector<16x256xf32>, vector<16x256xf32> -> vector<16x256xf32>
    %c0_8 = arith.constant 0 : index
    %c0_9 = arith.constant 0 : index
    %7 = vector.load %arg5[%c0_8, %c0_9] : memref<1x256xf32, #tpu.memory_space<vmem>>, vector<1x256xf32>
    %8 = vector.broadcast %7 : vector<1x256xf32> to vector<16x256xf32>
    %9 = arith.addf %6, %8 : vector<16x256xf32>
    %c0_10 = arith.constant 0 : index
    %c0_11 = arith.constant 0 : index
    %10 = vector.load %arg6[%c0_10, %c0_11] : memref<16x256xf32, #tpu.memory_space<vmem>>, vector<16x256xf32>
    tpu.vector_store %arg6[%c0_10, %c0_11], %9 {strides = array<i32>} : memref<16x256xf32, #tpu.memory_space<vmem>>, vector<16x256xf32>,
    %11 = vector.extract_strided_slice %9 {offsets = [0, 0], sizes = [16, 128], strides = [1, 1]} : vector<16x256xf32> to vector<16x128xf32>
    %cst_12 = arith.constant dense<0.000000e+00> : vector<128xf32>
    %12 = vector.multi_reduction <add>, %11, %cst_12 [0] : vector<16x128xf32> to vector<128xf32>
    %13 = vector.shape_cast %12 : vector<128xf32> to vector<1x128xf32>
    %14 = arith.mulf %11, %11 : vector<16x128xf32>
    %cst_13 = arith.constant dense<0.000000e+00> : vector<128xf32>
    %15 = vector.multi_reduction <add>, %14, %cst_13 [0] : vector<16x128xf32> to vector<128xf32>
    %16 = vector.shape_cast %15 : vector<128xf32> to vector<1x128xf32>
    %17 = tpu.iota {dimensions = array<i32: 0>} : vector<8x128xi32>
    %c0_i32 = arith.constant 0 : i32
    %18 = vector.broadcast %c0_i32 : i32 to vector<8x128xi32>
    %19 = arith.cmpi eq, %17, %18 : vector<8x128xi32>
    %c1_i32 = arith.constant 1 : i32
    %20 = vector.broadcast %c1_i32 : i32 to vector<8x128xi32>
    %21 = arith.cmpi eq, %17, %20 : vector<8x128xi32>
    %cst_14 = arith.constant 0.000000e+00 : f32
    %22 = vector.shape_cast %16 : vector<1x128xf32> to vector<1x128xf32>
    %23 = vector.broadcast %22 : vector<1x128xf32> to vector<8x128xf32>
    %24 = vector.broadcast %cst_14 : f32 to vector<8x128xf32>
    %25 = arith.select %21, %23, %24 : vector<8x128xi1>, vector<8x128xf32>
    %26 = vector.shape_cast %13 : vector<1x128xf32> to vector<1x128xf32>
    %27 = vector.broadcast %26 : vector<1x128xf32> to vector<8x128xf32>
    %28 = arith.select %19, %27, %25 : vector<8x128xi1>, vector<8x128xf32>
    %c0_15 = arith.constant 0 : index
    %c0_16 = arith.constant 0 : index
    %29 = vector.load %arg7[%c0_15, %c0_16] : memref<8x128xf32, #tpu.memory_space<vmem>>, vector<8x128xf32>
    tpu.vector_store %arg7[%c0_15, %c0_16], %28 {strides = array<i32>} : memref<8x128xf32, #tpu.memory_space<vmem>>, vector<8x128xf32>,
    return
  }
  func.func @transform_0(%arg0: i32) -> (i32, i32) {
    %c0_i32 = arith.constant 0 : i32
    %c0_i32_0 = arith.constant 0 : i32
    return %arg0, %c0_i32 : i32, i32
  }
  func.func @transform_1(%arg0: i32) -> (i32, i32) {
    %c0_i32 = arith.constant 0 : i32
    %c0_i32_0 = arith.constant 0 : i32
    %c0_i32_1 = arith.constant 0 : i32
    return %c0_i32, %c0_i32_0 : i32, i32
  }
  func.func @transform_2(%arg0: i32) -> (i32, i32) {
    %c0_i32 = arith.constant 0 : i32
    %c0_i32_0 = arith.constant 0 : i32
    return %arg0, %c0_i32 : i32, i32
  }
  func.func @transform_3(%arg0: i32) -> (i32, i32) {
    %c0_i32 = arith.constant 0 : i32
    %c0_i32_0 = arith.constant 0 : i32
    %c0_i32_1 = arith.constant 0 : i32
    return %c0_i32, %c0_i32_0 : i32, i32
  }
  func.func @transform_4(%arg0: i32) -> (i32, i32) {
    %c0_i32 = arith.constant 0 : i32
    %c0_i32_0 = arith.constant 0 : i32
    %c0_i32_1 = arith.constant 0 : i32
    return %c0_i32, %c0_i32_0 : i32, i32
  }
  func.func @transform_5(%arg0: i32) -> (i32, i32) {
    %c0_i32 = arith.constant 0 : i32
    %c0_i32_0 = arith.constant 0 : i32
    return %arg0, %c0_i32 : i32, i32
  }
  func.func @transform_6(%arg0: i32) -> (i32, i32) {
    %c0_i32 = arith.constant 0 : i32
    %c0_i32_0 = arith.constant 0 : i32
    return %arg0, %c0_i32 : i32, i32
  }
}

</mosaic_0001>

<llo_original>
// kernel: tpu_custom_call.1
$region0: #{tpu_custom_call.1}
  #allocation0 [shape = 'u32[]', space=smem, size = 0x4, offset = 0x4, fixed_abs, tag = 'smem constant byte address 0x4 - core index']
  #allocation1 [shape = 'u32[144,128]{1,0:T(1,128)}', space=vmem, size = 0x12000, scoped, tag = 'internal scratch']
  %s0 = inlined_call_operand.vmem [shape: bf16[32,32], index: 0, kind: input, shape index: {}]
  %s1 = inlined_call_operand.vmem [shape: bf16[32,8], index: 1, kind: input, shape index: {}]
  %s2 = inlined_call_operand.vmem [shape: f32[32,8], index: 2, kind: input, shape index: {}]
  %s3 = inlined_call_operand.vmem [shape: f32[16,256], index: 3, kind: input, shape index: {}]
  %s4 = inlined_call_operand.vmem [shape: f32[1,256], index: 4, kind: input, shape index: {}]
  %s5 = inlined_call_operand.hbm [shape: f32[32,256], index: 5, kind: output, shape index: {0}]
  %s6 = inlined_call_operand.hbm [shape: f32[16,128], index: 6, kind: output, shape index: {1}]
  %7 = xla_tuple %s5, %s6
  %s8 = sld [smem:[#allocation0]]
  $region61: #{tpu_custom_call.1} parent=0
    _
  %s10 = ssub.s32 1, %s8
  %s11 = scalar_select 0, %s10, %s8
  $region1: #{tpu_custom_call.1} parent=0
    #allocation2 [shape = 'u8[32768]{0}', space=vmem, size = 0x8000, scoped, tag = 'output window, operand 0']
    #allocation3 [shape = 's32[2]{0}', space=sflag, size = 0x8, scoped, tag = 'scoped memory for tpu_custom_call.1']
    #allocation4 [shape = 'u8[8192]{0}', space=vmem, size = 0x2000, scoped, tag = 'output window, operand 1']
    #allocation5 [shape = 's32[2]{0}', space=sflag, size = 0x8, scoped, tag = 'scoped memory for tpu_custom_call.1']
    %12 = vsyncpa [#allocation3], 0
    %s13 = scalar_lea.sflag [#allocation3], 1
    %14 = vsyncpa %s13, 0
    %15 = vsyncpa [#allocation5], 0
    %s16 = scalar_lea.sflag [#allocation5], 1
    %17 = vsyncpa %s16, 0
    loop: start=0, step=1, limit=4
    $region2: #{tpu_custom_call.1} parent=1 // loop_pre_header
      _
    $region3: #{tpu_custom_call.1} parent=1 // loop_header
      %s19 = sphi 0, %s23
      %p20 = scmp.ge.s32.totalorder %s19, 4
      %s29 = sphi 0, %s31
      %s32 = sphi 0, %s29
      %s33 = sphi 0, %s32
      %s49 = sphi 0, %s33
      %s53 = sphi 0, %s53
      %s55 = sphi 0, %s53
      %s56 = sphi 0, %s55
      %s70 = sphi 0, %s56
      %s76 = sphi 0, %s78
      %s79 = sphi 0, %s76
      %s80 = sphi 0, %s79
      %s96 = sphi 0, %s80
      %s100 = sphi 0, %s100
      %s102 = sphi 0, %s100
      %s103 = sphi 0, %s102
      %s117 = sphi 0, %s103
      %s121 = sphi 0, %s121
      %s123 = sphi 0, %s121
      %s124 = sphi 0, %s123
      %s138 = sphi 0, %s124
      %s144 = sphi 0, %s146
      %s147 = sphi 0, %s144
      %s148 = sphi 0, %s147
      %s164 = sphi 0, %s148
      %s170 = sphi 0, %s172
      %s173 = sphi 0, %s170
      %s174 = sphi 0, %s173
      %s190 = sphi 0, %s174
    $region4: #{tpu_custom_call.1} parent=1 // loop_header_branch
      %22 = sbr.rel (%p20) target = $region8
    $region5: #{tpu_custom_call.1} parent=1 // loop_body
      %s24 = ssub.s32 %s19, 1
      %s25 = ssub.s32 %s19, 2
      %s26 = sadd.s32 %s19, 1
      %s27 = ssub.s32 %s19, %s26
      %p28 = scmp.eq.s32.totalorder %s27, 0
      %s30 = sadd.s32 %s29, 1
      %s31 = scalar_select %p28, %s29, %s30
      %p34 = pneg %p28
      %p35 = scmp.eq.s32.totalorder %s19, 1
      %p36 = por %p34, %p35
      %p37 = scmp.ne.s32.totalorder %s29, %s32
      %p38 = scmp.eq.s32.totalorder %s19, 0
      %p39 = por %p37, %p38
      %p40 = scmp.ne.s32.totalorder %s29, %s32
      %p41 = scmp.eq.s32.totalorder %s24, 1
      %p42 = por %p40, %p41
      %p43 = scmp.ne.s32.totalorder %s32, %s33
      %p44 = scmp.eq.s32.totalorder %s24, 0
      %p45 = por %p43, %p44
      %p46 = scmp.ne.s32.totalorder %s32, %s33
      %p47 = scmp.eq.s32.totalorder %s25, 1
      %p48 = por %p46, %p47
      %p50 = scmp.ne.s32.totalorder %s33, %s49
      %p51 = scmp.eq.s32.totalorder %s25, 0
      %p52 = por %p50, %p51
      %s54 = sadd.s32 %s53, 1
      %p57 = scmp.eq.s32.totalorder %s19, 1
      %p58 = scmp.ne.s32.totalorder %s53, %s55
      %p59 = scmp.eq.s32.totalorder %s19, 0
      %p60 = por %p58, %p59
      %p61 = scmp.ne.s32.totalorder %s53, %s55
      %p62 = scmp.eq.s32.totalorder %s24, 1
      %p63 = por %p61, %p62
      %p64 = scmp.ne.s32.totalorder %s55, %s56
      %p65 = scmp.eq.s32.totalorder %s24, 0
      %p66 = por %p64, %p65
      %p67 = scmp.ne.s32.totalorder %s55, %s56
      %p68 = scmp.eq.s32.totalorder %s25, 1
      %p69 = por %p67, %p68
      %p71 = scmp.ne.s32.totalorder %s56, %s70
      %p72 = scmp.eq.s32.totalorder %s25, 0
      %p73 = por %p71, %p72
      %s74 = ssub.s32 %s19, %s26
      %p75 = scmp.eq.s32.totalorder %s74, 0
      %s77 = sadd.s32 %s76, 1
      %s78 = scalar_select %p75, %s76, %s77
      %p81 = pneg %p75
      %p82 = scmp.eq.s32.totalorder %s19, 1
      %p83 = por %p81, %p82
      %p84 = scmp.ne.s32.totalorder %s76, %s79
      %p85 = scmp.eq.s32.totalorder %s19, 0
      %p86 = por %p84, %p85
      %p87 = scmp.ne.s32.totalorder %s76, %s79
      %p88 = scmp.eq.s32.totalorder %s24, 1
      %p89 = por %p87, %p88
      %p90 = scmp.ne.s32.totalorder %s79, %s80
      %p91 = scmp.eq.s32.totalorder %s24, 0
      %p92 = por %p90, %p91
      %p93 = scmp.ne.s32.totalorder %s79, %s80
      %p94 = scmp.eq.s32.totalorder %s25, 1
      %p95 = por %p93, %p94
      %p97 = scmp.ne.s32.totalorder %s80, %s96
      %p98 = scmp.eq.s32.totalorder %s25, 0
      %p99 = por %p97, %p98
      %s101 = sadd.s32 %s100, 1
      %p104 = scmp.eq.s32.totalorder %s19, 1
      %p105 = scmp.ne.s32.totalorder %s100, %s102
      %p106 = scmp.eq.s32.totalorder %s19, 0
      %p107 = por %p105, %p106
      %p108 = scmp.ne.s32.totalorder %s100, %s102
      %p109 = scmp.eq.s32.totalorder %s24, 1
      %p110 = por %p108, %p109
      %p111 = scmp.ne.s32.totalorder %s102, %s103
      %p112 = scmp.eq.s32.totalorder %s24, 0
      %p113 = por %p111, %p112
      %p114 = scmp.ne.s32.totalorder %s102, %s103
      %p115 = scmp.eq.s32.totalorder %s25, 1
      %p116 = por %p114, %p115
      %p118 = scmp.ne.s32.totalorder %s103, %s117
      %p119 = scmp.eq.s32.totalorder %s25, 0
      %p120 = por %p118, %p119
      %s122 = sadd.s32 %s121, 1
      %p125 = scmp.eq.s32.totalorder %s19, 1
      %p126 = scmp.ne.s32.totalorder %s121, %s123
      %p127 = scmp.eq.s32.totalorder %s19, 0
      %p128 = por %p126, %p127
      %p129 = scmp.ne.s32.totalorder %s121, %s123
      %p130 = scmp.eq.s32.totalorder %s24, 1
      %p131 = por %p129, %p130
      %p132 = scmp.ne.s32.totalorder %s123, %s124
      %p133 = scmp.eq.s32.totalorder %s24, 0
      %p134 = por %p132, %p133
      %p135 = scmp.ne.s32.totalorder %s123, %s124
      %p136 = scmp.eq.s32.totalorder %s25, 1
      %p137 = por %p135, %p136
      %p139 = scmp.ne.s32.totalorder %s124, %s138
      %p140 = scmp.eq.s32.totalorder %s25, 0
      %p141 = por %p139, %p140
      %s142 = ssub.s32 %s19, %s26
      %p143 = scmp.eq.s32.totalorder %s142, 0
      %s145 = sadd.s32 %s144, 1
      %s146 = scalar_select %p143, %s144, %s145
      %p149 = pneg %p143
      %p150 = scmp.eq.s32.totalorder %s19, 1
      %p151 = por %p149, %p150
      %p152 = scmp.ne.s32.totalorder %s144, %s147
      %p153 = scmp.eq.s32.totalorder %s19, 0
      %p154 = por %p152, %p153
      %p155 = scmp.ne.s32.totalorder %s144, %s147
      %p156 = scmp.eq.s32.totalorder %s24, 1
      %p157 = por %p155, %p156
      %p158 = scmp.ne.s32.totalorder %s147, %s148
      %p159 = scmp.eq.s32.totalorder %s24, 0
      %p160 = por %p158, %p159
      %p161 = scmp.ne.s32.totalorder %s147, %s148
      %p162 = scmp.eq.s32.totalorder %s25, 1
      %p163 = por %p161, %p162
      %p165 = scmp.ne.s32.totalorder %s148, %s164
      %p166 = scmp.eq.s32.totalorder %s25, 0
      %p167 = por %p165, %p166
      %s168 = ssub.s32 %s19, %s26
      %p169 = scmp.eq.s32.totalorder %s168, 0
      %s171 = sadd.s32 %s170, 1
      %s172 = scalar_select %p169, %s170, %s171
      %p175 = pneg %p169
      %p176 = scmp.eq.s32.totalorder %s19, 1
      %p177 = por %p175, %p176
      %p178 = scmp.ne.s32.totalorder %s170, %s173
      %p179 = scmp.eq.s32.totalorder %s19, 0
      %p180 = por %p178, %p179
      %p181 = scmp.ne.s32.totalorder %s170, %s173
      %p182 = scmp.eq.s32.totalorder %s24, 1
      %p183 = por %p181, %p182
      %p184 = scmp.ne.s32.totalorder %s173, %s174
      %p185 = scmp.eq.s32.totalorder %s24, 0
      %p186 = por %p184, %p185
      %p187 = scmp.ne.s32.totalorder %s173, %s174
      %p188 = scmp.eq.s32.totalorder %s25, 1
      %p189 = por %p187, %p188
      %p191 = scmp.ne.s32.totalorder %s174, %s190
      %p192 = scmp.eq.s32.totalorder %s25, 0
      %p193 = por %p191, %p192
      %p194 = scmp.le.s32.totalorder 1, %s19
      %p195 = scmp.lt.s32.totalorder %s19, 3
      %p196 = pnand %p194, %p195
      %p197 = pneg %p196
      // Predicated region
      $region9: #{tpu_custom_call.1} parent=5 // pred_check
        _
      $region10: #{tpu_custom_call.1} parent=5 // pred_check_branch
        %199 = sbr.rel (%p196) target = $region12
      $region11: #{tpu_custom_call.1} parent=5 // pred_region
        %s200 = ssub.s32 %s19, 1
        // Predicated region
        $region13: #{tpu_custom_call.1} parent=11 // pred_check
          %p201 = pneg %p66
        $region14: #{tpu_custom_call.1} parent=11 // pred_check_branch
          %203 = sbr.rel (%p201) target = $region16
        $region15: #{tpu_custom_call.1} parent=11 // pred_region
          _
        $region16: #{tpu_custom_call.1} parent=11 // pred_fallthru
          _
        // Predicated region
        $region17: #{tpu_custom_call.1} parent=11 // pred_check
          %p204 = pneg %p113
        $region18: #{tpu_custom_call.1} parent=11 // pred_check_branch
          %206 = sbr.rel (%p204) target = $region20
        $region19: #{tpu_custom_call.1} parent=11 // pred_region
          _
        $region20: #{tpu_custom_call.1} parent=11 // pred_fallthru
          _
        // Predicated region
        $region21: #{tpu_custom_call.1} parent=11 // pred_check
          %p207 = pneg %p134
        $region22: #{tpu_custom_call.1} parent=11 // pred_check_branch
          %209 = sbr.rel (%p207) target = $region24
        $region23: #{tpu_custom_call.1} parent=11 // pred_region
          _
        $region24: #{tpu_custom_call.1} parent=11 // pred_fallthru
          _
      $region12: #{tpu_custom_call.1} parent=5 // pred_fallthru
        _
      %p210 = scmp.lt.s32.totalorder %s19, 2
      // Predicated region
      $region25: #{tpu_custom_call.1} parent=5 // pred_check
        %p211 = pneg %p210
      $region26: #{tpu_custom_call.1} parent=5 // pred_check_branch
        %213 = sbr.rel (%p211) target = $region28
      $region27: #{tpu_custom_call.1} parent=5 // pred_region
        // Predicated region
        $region29: #{tpu_custom_call.1} parent=27 // pred_check
          %p214 = pneg %p39
        $region30: #{tpu_custom_call.1} parent=27 // pred_check_branch
          %216 = sbr.rel (%p214) target = $region32
        $region31: #{tpu_custom_call.1} parent=27 // pred_region
          %s217 = smul.u32 2, %s19
          %p218 = scmp.lt.s32.totalorder %s217, 3
          %s219 = scalar_select %p218, %s217, 3
          %s220 = smul.addr %s219, 4
          %s221 = scalar_lea.vmem %s0, %s220
          %s222 = smul.u32 2, %s19
        $region32: #{tpu_custom_call.1} parent=27 // pred_fallthru
          _
        // Predicated region
        $region33: #{tpu_custom_call.1} parent=27 // pred_check
          %p223 = pneg %p86
        $region34: #{tpu_custom_call.1} parent=27 // pred_check_branch
          %225 = sbr.rel (%p223) target = $region36
        $region35: #{tpu_custom_call.1} parent=27 // pred_region
          %s226 = smul.u32 2, %s19
          %p227 = scmp.lt.s32.totalorder %s226, 3
          %s228 = scalar_select %p227, %s226, 3
          %s229 = smul.addr %s228, 8
          %s230 = scalar_lea.vmem %s2, %s229
          %s231 = smul.u32 2, %s19
        $region36: #{tpu_custom_call.1} parent=27 // pred_fallthru
          _
      $region28: #{tpu_custom_call.1} parent=5 // pred_fallthru
        _
      %p232 = scmp.le.s32.totalorder 1, %s19
      %p233 = scmp.lt.s32.totalorder %s19, 3
      %p234 = pnand %p232, %p233
      %p235 = pneg %p234
      // Predicated region
      $region37: #{tpu_custom_call.1} parent=5 // pred_check
        _
      $region38: #{tpu_custom_call.1} parent=5 // pred_check_branch
        %237 = sbr.rel (%p234) target = $region40
      $region39: #{tpu_custom_call.1} parent=5 // pred_region
        %s238 = ssub.s32 %s19, 1
        %s239 = smul.u32 2, %s24
        %p240 = scmp.lt.s32.totalorder %s239, 3
        %s241 = scalar_select %p240, %s239, 3
        %s242 = smul.addr %s241, 4
        %s243 = scalar_lea.vmem %s0, %s242
        %p244 = pneg %p45
        %p245 = pneg %p42
        %p246 = pneg %p66
        %p247 = pneg %p63
        %s248 = smul.u32 2, %s24
        %p249 = scmp.lt.s32.totalorder %s248, 3
        %s250 = scalar_select %p249, %s248, 3
        %s251 = smul.addr %s250, 8
        %s252 = scalar_lea.vmem %s2, %s251
        %p253 = pneg %p92
        %p254 = pneg %p89
        %p255 = pneg %p113
        %p256 = pneg %p110
        %p257 = pneg %p134
        %p258 = pneg %p131
        %p259 = pneg %p160
        %p260 = pneg %p157
        %s261 = sand.u32 %s147, 1
        %s262 = scalar_lea.sflag [#allocation3], %s261
        %s263 = sand.u32 %s147, 1
        %s264 = smul.addr %s263, 32
        %s265 = scalar_lea.vmem [#allocation2], %s264
        %p266 = pneg %p186
        %p267 = pneg %p183
        %s268 = sand.u32 %s173, 1
        %s269 = scalar_lea.sflag [#allocation5], %s268
        %s270 = sand.u32 %s173, 1
        %s271 = smul.addr %s270, 8
        %s272 = scalar_lea.vmem [#allocation4], %s271
        %s273 = smul.u32 2, %s24
        %p274 = scmp.lt.s32.totalorder %s273, 3
        %s275 = scalar_select %p274, %s273, 3
        %s276 = smul.addr %s275, 4
        %s277 = scalar_lea.vmem %s0, %s276
        %s278 = smul.u32 2, %s24
        %s279 = smul.u32 2, %s24
        %p280 = scmp.lt.s32.totalorder %s279, 3
        %s281 = scalar_select %p280, %s279, 3
        %s282 = smul.addr %s281, 8
        %s283 = scalar_lea.vmem %s2, %s282
        %s284 = smul.u32 2, %s24
        %s285 = smul.u32 2, %s24
        %v287 = vld [vmem:[%s277] sm:$0xf]
        %v288 = vld [vmem:[%s277 + $0x4] sm:$0xf]
        %v289 = vld [vmem:[%s1] sm:$0xf]
        %v290 = vld [vmem:[%s1 + $0x4] sm:$0xf]
        %v291 = vld [vmem:[%s1 + $0x8] sm:$0xf]
        %v292 = vld [vmem:[%s1 + $0xc] sm:$0xf]
        %v295 = vunpack.c.l.b16 %v287
        %v296 = vunpack.c.l.b16 %v288
        %v297 = vpack.c.b16 %v296, %v295
        %v302 = vunpack.c.l.b16 %v289
        %v303 = vunpack.c.l.b16 %v290
        %v304 = vunpack.c.l.b16 %v291
        %v305 = vunpack.c.l.b16 %v292
        %v306 = vpack.c.b16 %v303, %v302
        %v307 = vpack.c.b16 %v305, %v304
        %vm310 = vcmask 261120
        %v312 = vsel %vm310, %v297, 0
        %314 = vmatprep.subr.bf16.mxu0 0
        %315 = vmatpush1.bf16.msra.mxu0 0
        %316 = vmatprep.subr.bf16.mxu0 0
        %317 = vmatpush1.bf16.msra.mxu0 0
        %318 = vmatprep.subr.bf16.mxu0 0
        %319 = vmatpush1.bf16.msra.mxu0 0
        %320 = vmatprep.subr.bf16.mxu0 0
        %321 = vmatpush1.bf16.msra.mxu0 0
        %322 = vmatprep.subr.bf16.mxu0 0
        %323 = vmatpush1.bf16.msra.mxu0 0
        %324 = vmatprep.subr.bf16.mxu0 0
        %325 = vmatpush1.bf16.msra.mxu0 0
        %326 = vmatprep.subr.bf16.mxu0 0
        %327 = vmatpush1.bf16.msra.mxu0 %v307
        %328 = vmatprep.subr.bf16.mxu0 0
        %329 = vmatpush1.bf16.msra.mxu0 %v306
        %330 = vmatprep.subr.bf16.mxu0 0
        %331 = vmatpush2.bf16.msra.mxu0 0
        %332 = vmatprep.subr.bf16.mxu0 0
        %333 = vmatpush2.bf16.msra.mxu0 0
        %334 = vmatprep.subr.bf16.mxu0 0
        %335 = vmatpush2.bf16.msra.mxu0 0
        %336 = vmatprep.subr.bf16.mxu0 0
        %337 = vmatpush2.bf16.msra.mxu0 0
        %338 = vmatprep.subr.bf16.mxu0 0
        %339 = vmatpush2.bf16.msra.mxu0 0
        %340 = vmatprep.subr.bf16.mxu0 0
        %341 = vmatpush2.bf16.msra.mxu0 0
        %342 = vmatprep.subr.bf16.mxu0 0
        %343 = vmatpush2.bf16.msra.mxu0 0
        %344 = vmatprep.subr.bf16.mxu0 0
        %345 = vmatpush2.bf16.msra.mxu0 0
        %346 = vmatprep.mubr.bf16.mxu0 0
        %347 = vmatmul.mubr.bf16.gmra.mxu0 %v312
        %v348 = vpop.f32.mrf.mxu0
        %v349 = vadd.f32 0.0, %v348
        %v350 = vpop.f32.mrf.mxu0
        %v351 = vpop.f32.mrf.mxu0
        %v352 = vadd.f32 0.0, %v351
        %v353 = vpop.f32.mrf.mxu0
        %354 = vdwg.mxu0
        %v355 = vld [vmem:[%s283] sm:$0xff]
        %v356 = vld [vmem:[%s283 + $0x8] sm:$0xff]
        %359 = vrot.lane.b32.xlu0 %v355, 8
        %v360 = vpop.permute.xlu0 %359
        %361 = vrot.lane.b32.xlu0 %v356, 8
        %v362 = vpop.permute.xlu0 %361
        %vm365 = vcmask 64512
        %v366 = vsel %vm365, %v349, %v360
        %v367 = vsel %vm365, %v352, %v362
        %v368 = vld [vmem:[%s3] sm:$0xff]
        %v369 = vld [vmem:[%s3 + $0x8] sm:$0xff]
        %v370 = vld [vmem:[%s3 + $0x10] sm:$0xff]
        %v371 = vld [vmem:[%s3 + $0x18] sm:$0xff]
        %v372 = vld [vmem:[%s4] sm:$0x3]
        %v374 = vlaneseq
        %v375 = vshrl.u32 %v374, 7
        %v376 = vsub.s32 0, %v375
        %v377 = vrot.slane %v372, %v376
        %v378 = vlaneseq
        %v379 = vshrl.u32 %v378, 7
        %v380 = vsub.s32 1, %v379
        %v381 = vrot.slane %v372, %v380
        %vm384 = vcmask 130048
        %v386 = vsel %vm384, %v366, 0
        %v389 = vsel %vm384, %v367, 0
        %391 = vmatprep.subr.mxu0 0.0
        %392 = vmatpush1.msra.mxu0 0.0
        %393 = vmatprep.subr.mxu0 0.0
        %394 = vmatpush1.msra.mxu0 0.0
        %395 = vmatprep.subr.mxu0 0.0
        %396 = vmatpush1.msra.mxu0 0.0
        %397 = vmatprep.subr.mxu0 0.0
        %398 = vmatpush1.msra.mxu0 0.0
        %399 = vmatprep.subr.mxu0 0.0
        %400 = vmatpush1.msra.mxu0 0.0
        %401 = vmatprep.subr.mxu0 0.0
        %402 = vmatpush1.msra.mxu0 0.0
        %403 = vmatprep.subr.mxu0 0.0
        %404 = vmatpush1.msra.mxu0 0.0
        %405 = vmatprep.subr.mxu0 0.0
        %406 = vmatpush1.msra.mxu0 0.0
        %407 = vmatprep.subr.mxu0 0.0
        %408 = vmatpush1.msra.mxu0 0.0
        %409 = vmatprep.subr.mxu0 0.0
        %410 = vmatpush1.msra.mxu0 0.0
        %411 = vmatprep.subr.mxu0 0.0
        %412 = vmatpush1.msra.mxu0 0.0
        %413 = vmatprep.subr.mxu0 0.0
        %414 = vmatpush1.msra.mxu0 0.0
        %415 = vmatprep.subr.mxu0 0.0
        %416 = vmatpush1.msra.mxu0 0.0
        %417 = vmatprep.subr.mxu0 0.0
        %418 = vmatpush1.msra.mxu0 0.0
        %419 = vmatprep.subr.mxu0 %v371
        %420 = vmatpush1.msra.mxu0 %v370
        %421 = vmatprep.subr.mxu0 %v369
        %422 = vmatpush1.msra.mxu0 %v368
        %423 = vmatprep.subr.mxu0 0.0
        %424 = vmatpush2.msra.mxu0 0.0
        %425 = vmatprep.subr.mxu0 0.0
        %426 = vmatpush2.msra.mxu0 0.0
        %427 = vmatprep.subr.mxu0 0.0
        %428 = vmatpush2.msra.mxu0 0.0
        %429 = vmatprep.subr.mxu0 0.0
        %430 = vmatpush2.msra.mxu0 0.0
        %431 = vmatprep.subr.mxu0 0.0
        %432 = vmatpush2.msra.mxu0 0.0
        %433 = vmatprep.subr.mxu0 0.0
        %434 = vmatpush2.msra.mxu0 0.0
        %435 = vmatprep.subr.mxu0 0.0
        %436 = vmatpush2.msra.mxu0 0.0
        %437 = vmatprep.subr.mxu0 0.0
        %438 = vmatpush2.msra.mxu0 0.0
        %439 = vmatprep.subr.mxu0 0.0
        %440 = vmatpush2.msra.mxu0 0.0
        %441 = vmatprep.subr.mxu0 0.0
        %442 = vmatpush2.msra.mxu0 0.0
        %443 = vmatprep.subr.mxu0 0.0
        %444 = vmatpush2.msra.mxu0 0.0
        %445 = vmatprep.subr.mxu0 0.0
        %446 = vmatpush2.msra.mxu0 0.0
        %447 = vmatprep.subr.mxu0 0.0
        %448 = vmatpush2.msra.mxu0 0.0
        %449 = vmatprep.subr.mxu0 0.0
        %450 = vmatpush2.msra.mxu0 0.0
        %451 = vmatprep.subr.mxu0 0.0
        %452 = vmatpush2.msra.mxu0 0.0
        %453 = vmatprep.subr.mxu0 0.0
        %454 = vmatpush2.msra.mxu0 0.0
        %455 = vmatprep.mubr.f32.mxu0 0.0
        %456 = vmatmul.mubr.f32.gmra.mxu0 %v386
        %v457 = vpop.f32.mrf.mxu0
        %v458 = vadd.f32 %v377, %v457
        %v459 = vpop.f32.mrf.mxu0
        %v460 = vadd.f32 %v381, %v459
        %461 = vmatprep.mubr.f32.mxu0 0.0
        %462 = vmatmul.mubr.f32.gmra.mxu0 %v389
        %v463 = vpop.f32.mrf.mxu0
        %v464 = vadd.f32 %v377, %v463
        %v465 = vpop.f32.mrf.mxu0
        %v466 = vadd.f32 %v381, %v465
        %467 = vdwg.mxu0
        %468 = vst [vmem:[%s265] sm:$0xff] %v458
        %469 = vst [vmem:[%s265 + $0x8] sm:$0xff] %v460
        %470 = vst [vmem:[%s265 + $0x10] sm:$0xff] %v464
        %471 = vst [vmem:[%s265 + $0x18] sm:$0xff] %v466
        %v472 = vadd.f32 %v458, %v464
        %v473 = vrot.slane %v472, 4
        %v474 = vadd.f32 %v472, %v473
        %v475 = vrot.slane %v474, 2
        %v476 = vadd.f32 %v474, %v475
        %v477 = vrot.slane %v476, 1
        %v478 = vadd.f32 %v476, %v477
        %v479 = vmul.f32 %v458, %v458
        %v480 = vmul.f32 %v464, %v464
        %v481 = vadd.f32 %v479, %v480
        %v482 = vrot.slane %v481, 4
        %v483 = vadd.f32 %v481, %v482
        %v484 = vrot.slane %v483, 2
        %v485 = vadd.f32 %v483, %v484
        %v486 = vrot.slane %v485, 1
        %v487 = vadd.f32 %v485, %v486
        %v488 = vlaneseq
        %v489 = vshrl.u32 %v488, 7
        %vm490 = vcmp.eq.s32.totalorder %v489, 0
        %vm491 = vcmp.eq.s32.totalorder %v489, 1
        %v492 = vsel %vm491, %v487, 0.0
        %v493 = vsel %vm490, %v478, %v492
        %494 = vst [vmem:[%s272] sm:$0xff] %v493
        %s495 = sand.u32 %s147, 1
        %s496 = scalar_lea.sflag [#allocation3], %s495
        %s497 = sand.u32 %s147, 1
        %s498 = smul.addr %s497, 32
        %s499 = scalar_lea.vmem [#allocation2], %s498
        %s500 = sand.u32 %s173, 1
        %s501 = scalar_lea.sflag [#allocation5], %s500
        %s502 = sand.u32 %s173, 1
        %s503 = smul.addr %s502, 8
        %s504 = scalar_lea.vmem [#allocation4], %s503
        // Predicated region
        $region41: #{tpu_custom_call.1} parent=39 // pred_check
          %p505 = pneg %p157
        $region42: #{tpu_custom_call.1} parent=39 // pred_check_branch
          %507 = sbr.rel (%p505) target = $region44
        $region43: #{tpu_custom_call.1} parent=39 // pred_region
          %s508 = smul.u32 2, %s24
          %s510 = ssub.s32 512, 512
          %511 = vsyncadd %s496, %s510
          %s512 = smul.addr %s508, 2
          %s513 = smul.addr %s512, 128
          %s514 = scalar_lea.hbm %s5, %s513
          %s515 = sshll.u32 %s499, 4
          %s516 = int_to_ptr.vmem [resolvable:$true] %s515
          %521 = dma.vmem_to_hbm [thread:$0]  %s516, 512, %s514, %s496, 256, 256, 16
        $region44: #{tpu_custom_call.1} parent=39 // pred_fallthru
          _
        // Predicated region
        $region45: #{tpu_custom_call.1} parent=39 // pred_check
          %p522 = pneg %p183
        $region46: #{tpu_custom_call.1} parent=39 // pred_check_branch
          %524 = sbr.rel (%p522) target = $region48
        $region47: #{tpu_custom_call.1} parent=39 // pred_region
          %s526 = ssub.s32 128, 128
          %527 = vsyncadd %s501, %s526
          %s528 = smul.addr %s24, 128
          %s529 = scalar_lea.hbm %s6, %s528
          %s531 = sshll.u32 %s504, 4
          %s532 = int_to_ptr.vmem [resolvable:$true] %s531
          %534 = dma.vmem_to_hbm [thread:$0]  %s532, 128, %s529, %s501
        $region48: #{tpu_custom_call.1} parent=39 // pred_fallthru
          _
      $region40: #{tpu_custom_call.1} parent=5 // pred_fallthru
        _
      %p535 = scmp.le.s32.totalorder 2, %s19
      // Predicated region
      $region49: #{tpu_custom_call.1} parent=5 // pred_check
        %p536 = pneg %p535
      $region50: #{tpu_custom_call.1} parent=5 // pred_check_branch
        %538 = sbr.rel (%p536) target = $region52
      $region51: #{tpu_custom_call.1} parent=5 // pred_region
        %s539 = ssub.s32 %s19, 2
        // Predicated region
        $region53: #{tpu_custom_call.1} parent=51 // pred_check
          %p540 = pneg %p163
        $region54: #{tpu_custom_call.1} parent=51 // pred_check_branch
          %542 = sbr.rel (%p540) target = $region56
        $region55: #{tpu_custom_call.1} parent=51 // pred_region
          %s543 = sand.u32 %s148, 1
          %s544 = scalar_lea.sflag [#allocation3], %s543
          %s545 = sand.u32 %s148, 1
          %s546 = smul.addr %s545, 32
          %s547 = scalar_lea.vmem [#allocation2], %s546
          %548 = dma.done %s544, 512
        $region56: #{tpu_custom_call.1} parent=51 // pred_fallthru
          _
        // Predicated region
        $region57: #{tpu_custom_call.1} parent=51 // pred_check
          %p549 = pneg %p189
        $region58: #{tpu_custom_call.1} parent=51 // pred_check_branch
          %551 = sbr.rel (%p549) target = $region60
        $region59: #{tpu_custom_call.1} parent=51 // pred_region
          %s552 = sand.u32 %s174, 1
          %s553 = scalar_lea.sflag [#allocation5], %s552
          %s554 = sand.u32 %s174, 1
          %s555 = smul.addr %s554, 8
          %s556 = scalar_lea.vmem [#allocation4], %s555
          %557 = dma.done %s553, 128
        $region60: #{tpu_custom_call.1} parent=51 // pred_fallthru
          _
      $region52: #{tpu_custom_call.1} parent=5 // pred_fallthru
        _
    $region6: #{tpu_custom_call.1} parent=1 // loop_footer
      %s23 = sadd.s32 1, %s19
    $region7: #{tpu_custom_call.1} parent=1 // loop_footer_branch
      %18 = sbr.rel target = $region3
    $region8: #{tpu_custom_call.1} parent=1 // loop_exit
      _
    %558 = vsyncpa [#allocation3], 1
    %s559 = scalar_lea.sflag [#allocation3], 1
    %560 = vsyncpa %s559, 1
    %561 = vsyncpa [#allocation5], 1
    %s562 = scalar_lea.sflag [#allocation5], 1
    %563 = vsyncpa %s562, 1

</llo_original>
